<compile_context>
chip_gen: v7x
topology: tpu7x:2x2x1
jax: 0.10.0
libtpu: 0.0.40
codegen_flags: <defaults>
</compile_context>

<pallas_src>
import jax
import jax.numpy as jnp
from jax.experimental import pallas as pl
from jax.experimental.pallas import tpu as pltpu

LANE = 128
SUBLANE = 8


def _round_up(x, m):
    return ((x + m - 1) // m) * m


def qnet_kernel(x_ref, w1_ref, b1_ref, w2_ref, b2_ref, w3_ref, b3_ref, o_ref):
    # in_block already flattened in the wrapper; cast the f32 x tile to bf16
    # here (saves the wrapper-side convert pass over x in HBM).
    x = x_ref[...].astype(jnp.bfloat16)
    # Hidden layer 1: bf16 MXU matmul, fp32 accumulation; bias + ReLU in fp32.
    h = jnp.dot(x, w1_ref[...], preferred_element_type=jnp.float32)
    h = jnp.maximum(h + b1_ref[...], 0.0)
    # Hidden layer 2.
    h = jnp.dot(h.astype(jnp.bfloat16), w2_ref[...], preferred_element_type=jnp.float32)
    h = jnp.maximum(h + b2_ref[...], 0.0)
    # Output layer: narrow (n_actions-wide) fp32 store; DMA-bound kernel so the
    # masked store is cheaper than a lane-padded tile + wrapper slice.
    q = jnp.dot(h.astype(jnp.bfloat16), w3_ref[...], preferred_element_type=jnp.float32)
    o_ref[...] = q + b3_ref[...]


def prepare_params(params):
    """One-time parameter conversion.

    Call at init / target-network sync time (NOT per forward): casts weights to
    bf16 (MXU inputs), keeps biases fp32 (fp32 epilogue), pads W1's input dim up
    to a lane multiple if needed. Removes the per-call weight cast/pad HBM pass.
    """
    w1, b1, w2, b2, w3, b3 = params
    D, H1 = w1.shape
    D_pad = _round_up(D, LANE)
    w1_b = w1.astype(jnp.bfloat16)
    if D_pad != D:
        w1_b = jnp.zeros((D_pad, H1), jnp.bfloat16).at[:D, :].set(w1_b)
    return (
        w1_b,
        b1.astype(jnp.float32).reshape(1, -1),
        w2.astype(jnp.bfloat16),
        b2.astype(jnp.float32).reshape(1, -1),
        w3.astype(jnp.bfloat16),
        b3.astype(jnp.float32).reshape(1, -1),
    )


def _choose_batch_tile(batch):
    """Pick the batch tile TB (grid has B_pad // TB steps).

    Tiny acting batches -> single tile (grid of 1). Otherwise keep >= 2 grid
    steps so v7x's two TensorCores both get work, capped at 512 rows to
    amortize per-grid-step overhead while keeping the double-buffered x tile
    at a few MB of VMEM.
    """
    b8 = _round_up(batch, SUBLANE)
    if b8 <= 64:
        return b8
    return min(512, _round_up((b8 + 1) // 2, SUBLANE))


def qnetwork_forward(x_obs, prep_params):
    """x_obs: (B, C, H, W) float32 -> Q-values (B, n_actions) float32.

    prep_params must come from prepare_params (bf16 weights, fp32 biases).
    """
    w1, b1, w2, b2, w3, b3 = prep_params
    B = x_obs.shape[0]
    D = 1
    for s in x_obs.shape[1:]:
        D *= s
    D_pad, H1 = w1.shape
    H2 = w2.shape[1]
    n_actions = w3.shape[1]

    TB = _choose_batch_tile(B)
    B_pad = _round_up(B, TB)

    # in_block: flatten only. x stays float32 (cast to bf16 inside the kernel),
    # so when B and D are already aligned there is no extra HBM pass over x.
    x = x_obs.reshape(B, D)
    if B_pad != B or D_pad != D:
        x = jnp.zeros((B_pad, D_pad), x.dtype).at[:B, :D].set(x)

    # Weights/biases: same block index on every grid step -> stay VMEM-resident.
    resident = lambda shape: pl.BlockSpec(shape, lambda i: (0, 0))

    q = pl.pallas_call(
        qnet_kernel,
        out_shape=jax.ShapeDtypeStruct((B_pad, n_actions), jnp.float32),
        grid=(B_pad // TB,),
        in_specs=[
            pl.BlockSpec((TB, D_pad), lambda i: (i, 0)),          # x tile streams
            resident((D_pad, H1)), resident((1, H1)),             # W1, b1
            resident((H1, H2)), resident((1, H2)),                # W2, b2
            resident((H2, n_actions)), resident((1, n_actions)),  # W3, b3
        ],
        out_specs=pl.BlockSpec((TB, n_actions), lambda i: (i, 0)),
        compiler_params=pltpu.CompilerParams(
            dimension_semantics=("parallel",),
            vmem_limit_bytes=32 << 20,
        ),
    )(x, w1, b1, w2, b2, w3, b3)

    # TODO(synk): for the B~2 acting loop, keep W1/W2/W3 VMEM-resident across
    # calls via a cross-pallas_call future (P10) instead of re-DMAing ~320 KB
    # of weights each step (or simply batch the acting envs).
    return q[:B] if B_pad != B else q


def init_params(key, in_dim, hidden, n_actions):
    """Deterministic synthetic fp32 parameters (shapes match the torch module)."""
    k1, k2, k3, k4, k5, k6 = jax.random.split(key, 6)
    # Weights stored as (in, out) == torch Linear weight (out, in) transposed.
    w1 = jax.random.normal(k1, (in_dim, hidden), jnp.float32) * (1.0 / jnp.sqrt(in_dim))
    b1 = jax.random.normal(k2, (1, hidden), jnp.float32) * 0.01
    w2 = jax.random.normal(k3, (hidden, hidden), jnp.float32) * (1.0 / jnp.sqrt(hidden))
    b2 = jax.random.normal(k4, (1, hidden), jnp.float32) * 0.01
    w3 = jax.random.normal(k5, (hidden, n_actions), jnp.float32) * (1.0 / jnp.sqrt(hidden))
    b3 = jax.random.normal(k6, (1, n_actions), jnp.float32) * 0.01
    return (w1, b1, w2, b2, w3, b3)


def reference_forward(x_nchw, params):
    """Pure-JAX reference with matching bf16-input / fp32-accum numerics."""
    w1, b1, w2, b2, w3, b3 = params
    x = x_nchw.reshape(x_nchw.shape[0], -1).astype(jnp.bfloat16)
    h = jnp.dot(x, w1.astype(jnp.bfloat16), preferred_element_type=jnp.float32) + b1
    h = jnp.maximum(h, 0.0)
    h = jnp.dot(h.astype(jnp.bfloat16), w2.astype(jnp.bfloat16),
                preferred_element_type=jnp.float32) + b2
    h = jnp.maximum(h, 0.0)
    return jnp.dot(h.astype(jnp.bfloat16), w3.astype(jnp.bfloat16),
                   preferred_element_type=jnp.float32) + b3


if __name__ == "__main__":
    # Small shapes consistent with the module: batch=2, obs = (4, 16, 16)
    B, C, H, W = 2, 4, 16, 16
    in_dim = C * H * W          # in_block.out_size (flatten) = 1024
    hidden = 128                # hidden_block MLP (128, 128)
    n_actions = 4               # config.action_space.n

    key = jax.random.PRNGKey(0)
    kx, kp = jax.random.split(key)
    x = jax.random.normal(kx, (B, C, H, W), jnp.float32)
    params = init_params(kp, in_dim, hidden, n_actions)

    prep = prepare_params(params)        # one-time (init / target-network sync)
    q = qnetwork_forward(x, prep)
    q = jax.block_until_ready(q)

    q_ref = reference_forward(x, params)
    assert q.shape == (B, n_actions)
    assert jnp.allclose(q, q_ref, atol=1e-2, rtol=1e-2), "mismatch vs reference"

    print("KERNEL_OK")
</pallas_src>

<mosaic_0001>
module attributes {stable_mosaic.version = 11 : i64} {
  func.func @qnet_kernel(%arg0: i32, %arg1: memref<8x1024xf32, #tpu.memory_space<vmem>>, %arg2: memref<1024x128xbf16, #tpu.memory_space<vmem>>, %arg3: memref<1x128xf32, #tpu.memory_space<vmem>>, %arg4: memref<128x128xbf16, #tpu.memory_space<vmem>>, %arg5: memref<1x128xf32, #tpu.memory_space<vmem>>, %arg6: memref<128x4xbf16, #tpu.memory_space<vmem>>, %arg7: memref<1x4xf32, #tpu.memory_space<vmem>>, %arg8: memref<8x4xf32, #tpu.memory_space<vmem>>) attributes {dimension_semantics = [#tpu.dimension_semantics<parallel>], iteration_bounds = array<i64: 1>, scalar_prefetch = 0 : i64, scratch_operands = 0 : i64, tpu.core_type = #tpu.core_type<tc>, window_params = [{transform_indices = @transform_0, window_bounds = array<i64: 8, 1024>}, {pipeline_mode = #tpu.pipeline_mode<synchronous>, transform_indices = @transform_1, window_bounds = array<i64: 1024, 128>}, {pipeline_mode = #tpu.pipeline_mode<synchronous>, transform_indices = @transform_2, window_bounds = array<i64: 1, 128>}, {pipeline_mode = #tpu.pipeline_mode<synchronous>, transform_indices = @transform_3, window_bounds = array<i64: 128, 128>}, {pipeline_mode = #tpu.pipeline_mode<synchronous>, transform_indices = @transform_4, window_bounds = array<i64: 1, 128>}, {pipeline_mode = #tpu.pipeline_mode<synchronous>, transform_indices = @transform_5, window_bounds = array<i64: 128, 4>}, {pipeline_mode = #tpu.pipeline_mode<synchronous>, transform_indices = @transform_6, window_bounds = array<i64: 1, 4>}, {transform_indices = @transform_7, window_bounds = array<i64: 8, 4>}]} {
    %c0 = arith.constant 0 : index
    %c0_0 = arith.constant 0 : index
    %0 = vector.load %arg1[%c0, %c0_0] : memref<8x1024xf32, #tpu.memory_space<vmem>>, vector<8x1024xf32>
    %1 = arith.truncf %0 : vector<8x1024xf32> to vector<8x1024xbf16>
    %c0_1 = arith.constant 0 : index
    %c0_2 = arith.constant 0 : index
    %2 = vector.load %arg2[%c0_1, %c0_2] : memref<1024x128xbf16, #tpu.memory_space<vmem>>, vector<1024x128xbf16>
    %cst = arith.constant dense<0.000000e+00> : vector<8x128xf32>
    %3 = tpu.matmul %1, %2, %cst {dimension_numbers = #tpu.dot_dimension_numbers<[1], [0], [0], [1], [0, 0, 1, 1], [], []>} : vector<8x1024xbf16>, vector<1024x128xbf16>, vector<8x128xf32> -> vector<8x128xf32>
    %c0_3 = arith.constant 0 : index
    %c0_4 = arith.constant 0 : index
    %4 = vector.load %arg3[%c0_3, %c0_4] : memref<1x128xf32, #tpu.memory_space<vmem>>, vector<1x128xf32>
    %5 = vector.broadcast %4 : vector<1x128xf32> to vector<8x128xf32>
    %6 = arith.addf %3, %5 : vector<8x128xf32>
    %cst_5 = arith.constant 0.000000e+00 : f32
    %7 = vector.broadcast %cst_5 : f32 to vector<8x128xf32>
    %8 = arith.maximumf %6, %7 : vector<8x128xf32>
    %9 = arith.truncf %8 : vector<8x128xf32> to vector<8x128xbf16>
    %c0_6 = arith.constant 0 : index
    %c0_7 = arith.constant 0 : index
    %10 = vector.load %arg4[%c0_6, %c0_7] : memref<128x128xbf16, #tpu.memory_space<vmem>>, vector<128x128xbf16>
    %cst_8 = arith.constant dense<0.000000e+00> : vector<8x128xf32>
    %11 = tpu.matmul %9, %10, %cst_8 {dimension_numbers = #tpu.dot_dimension_numbers<[1], [0], [0], [1], [0, 0, 1, 1], [], []>} : vector<8x128xbf16>, vector<128x128xbf16>, vector<8x128xf32> -> vector<8x128xf32>
    %c0_9 = arith.constant 0 : index
    %c0_10 = arith.constant 0 : index
    %12 = vector.load %arg5[%c0_9, %c0_10] : memref<1x128xf32, #tpu.memory_space<vmem>>, vector<1x128xf32>
    %13 = vector.broadcast %12 : vector<1x128xf32> to vector<8x128xf32>
    %14 = arith.addf %11, %13 : vector<8x128xf32>
    %cst_11 = arith.constant 0.000000e+00 : f32
    %15 = vector.broadcast %cst_11 : f32 to vector<8x128xf32>
    %16 = arith.maximumf %14, %15 : vector<8x128xf32>
    %17 = arith.truncf %16 : vector<8x128xf32> to vector<8x128xbf16>
    %c0_12 = arith.constant 0 : index
    %c0_13 = arith.constant 0 : index
    %18 = vector.load %arg6[%c0_12, %c0_13] : memref<128x4xbf16, #tpu.memory_space<vmem>>, vector<128x4xbf16>
    %cst_14 = arith.constant dense<0.000000e+00> : vector<8x4xf32>
    %19 = tpu.matmul %17, %18, %cst_14 {dimension_numbers = #tpu.dot_dimension_numbers<[1], [0], [0], [1], [0, 0, 1, 1], [], []>} : vector<8x128xbf16>, vector<128x4xbf16>, vector<8x4xf32> -> vector<8x4xf32>
    %c0_15 = arith.constant 0 : index
    %c0_16 = arith.constant 0 : index
    %20 = vector.load %arg7[%c0_15, %c0_16] : memref<1x4xf32, #tpu.memory_space<vmem>>, vector<1x4xf32>
    %21 = vector.broadcast %20 : vector<1x4xf32> to vector<8x4xf32>
    %22 = arith.addf %19, %21 : vector<8x4xf32>
    %c0_17 = arith.constant 0 : index
    %c0_18 = arith.constant 0 : index
    %23 = vector.load %arg8[%c0_17, %c0_18] : memref<8x4xf32, #tpu.memory_space<vmem>>, vector<8x4xf32>
    tpu.vector_store %arg8[%c0_17, %c0_18], %22 {strides = array<i32>} : memref<8x4xf32, #tpu.memory_space<vmem>>, vector<8x4xf32>,
    return
  }
  func.func @transform_0(%arg0: i32) -> (i32, i32) {
    %c0_i32 = arith.constant 0 : i32
    %c0_i32_0 = arith.constant 0 : i32
    return %arg0, %c0_i32 : i32, i32
  }
  func.func @transform_1(%arg0: i32) -> (i32, i32) {
    %c0_i32 = arith.constant 0 : i32
    %c0_i32_0 = arith.constant 0 : i32
    %c0_i32_1 = arith.constant 0 : i32
    return %c0_i32, %c0_i32_0 : i32, i32
  }
  func.func @transform_2(%arg0: i32) -> (i32, i32) {
    %c0_i32 = arith.constant 0 : i32
    %c0_i32_0 = arith.constant 0 : i32
    %c0_i32_1 = arith.constant 0 : i32
    return %c0_i32, %c0_i32_0 : i32, i32
  }
  func.func @transform_3(%arg0: i32) -> (i32, i32) {
    %c0_i32 = arith.constant 0 : i32
    %c0_i32_0 = arith.constant 0 : i32
    %c0_i32_1 = arith.constant 0 : i32
    return %c0_i32, %c0_i32_0 : i32, i32
  }
  func.func @transform_4(%arg0: i32) -> (i32, i32) {
    %c0_i32 = arith.constant 0 : i32
    %c0_i32_0 = arith.constant 0 : i32
    %c0_i32_1 = arith.constant 0 : i32
    return %c0_i32, %c0_i32_0 : i32, i32
  }
  func.func @transform_5(%arg0: i32) -> (i32, i32) {
    %c0_i32 = arith.constant 0 : i32
    %c0_i32_0 = arith.constant 0 : i32
    %c0_i32_1 = arith.constant 0 : i32
    return %c0_i32, %c0_i32_0 : i32, i32
  }
  func.func @transform_6(%arg0: i32) -> (i32, i32) {
    %c0_i32 = arith.constant 0 : i32
    %c0_i32_0 = arith.constant 0 : i32
    %c0_i32_1 = arith.constant 0 : i32
    return %c0_i32, %c0_i32_0 : i32, i32
  }
  func.func @transform_7(%arg0: i32) -> (i32, i32) {
    %c0_i32 = arith.constant 0 : i32
    %c0_i32_0 = arith.constant 0 : i32
    return %arg0, %c0_i32 : i32, i32
  }
}

</mosaic_0001>

<llo_original>
// kernel: tpu_custom_call.1
$region0: #{tpu_custom_call.1}
  #allocation0 [shape = 'u32[]', space=smem, size = 0x4, offset = 0x4, fixed_abs, tag = 'smem constant byte address 0x4 - core index']
  #allocation1 [shape = 'u32[144,128]{1,0:T(1,128)}', space=vmem, size = 0x12000, scoped, tag = 'internal scratch']
  %s0 = inlined_call_operand.vmem [shape: f32[8,1024], index: 0, kind: input, shape index: {}]
  %s1 = inlined_call_operand.hbm [shape: bf16[1024,128], index: 1, kind: input, shape index: {}]
  %s2 = inlined_call_operand.vmem [shape: f32[1,128], index: 2, kind: input, shape index: {}]
  %s3 = inlined_call_operand.hbm [shape: bf16[128,128], index: 3, kind: input, shape index: {}]
  %s4 = inlined_call_operand.vmem [shape: f32[1,128], index: 4, kind: input, shape index: {}]
  %s5 = inlined_call_operand.vmem [shape: bf16[128,4], index: 5, kind: input, shape index: {}]
  %s6 = inlined_call_operand.vmem [shape: f32[1,4], index: 6, kind: input, shape index: {}]
  %s7 = inlined_call_operand.vmem [shape: f32[8,4], index: 7, kind: output, shape index: {}]
  %s8 = sld [smem:[#allocation0]]
  $region46: #{tpu_custom_call.1} parent=0
    _
  %s10 = ssub.s32 1, %s8
  %s11 = scalar_select 0, %s10, %s8
  $region1: #{tpu_custom_call.1} parent=0
    #allocation2 [shape = 'u8[262144]{0}', space=vmem, size = 0x40000, scoped, tag = 'input window, operand 1, single buffered']
    #allocation3 [shape = 's32[1]{0}', space=sflag, size = 0x4, scoped, tag = 'scoped memory for tpu_custom_call.1']
    #allocation4 [shape = 'u8[32768]{0}', space=vmem, size = 0x8000, scoped, tag = 'input window, operand 3, single buffered']
    #allocation5 [shape = 's32[1]{0}', space=sflag, size = 0x4, scoped, tag = 'scoped memory for tpu_custom_call.1']
    %12 = vsyncpa [#allocation3], 0
    %13 = vsyncpa [#allocation5], 0
    // Predicated region
    $region2: #{tpu_custom_call.1} parent=1 // pred_check
      _
    $region3: #{tpu_custom_call.1} parent=1 // pred_check_branch
      %15 = sbr.rel (0) target = $region5
    $region4: #{tpu_custom_call.1} parent=1 // pred_region
      _
    $region5: #{tpu_custom_call.1} parent=1 // pred_fallthru
      _
    // Predicated region
    $region6: #{tpu_custom_call.1} parent=1 // pred_check
      _
    $region7: #{tpu_custom_call.1} parent=1 // pred_check_branch
      %17 = sbr.rel (0) target = $region9
    $region8: #{tpu_custom_call.1} parent=1 // pred_region
      %s19 = ssub.s32 8192, 8192
      %20 = vsyncadd [#allocation3], %s19
      %s21 = sshll.u32 [#allocation2], 4
      %s22 = int_to_ptr.vmem [resolvable:$true] %s21
      %27 = dma.hbm_to_vmem [thread:$0]  %s1, 8192, %s22, [#allocation3], 64, 64, 4
    $region9: #{tpu_custom_call.1} parent=1 // pred_fallthru
      _
    // Predicated region
    $region10: #{tpu_custom_call.1} parent=1 // pred_check
      _
    $region11: #{tpu_custom_call.1} parent=1 // pred_check_branch
      %29 = sbr.rel (0) target = $region13
    $region12: #{tpu_custom_call.1} parent=1 // pred_region
      _
    $region13: #{tpu_custom_call.1} parent=1 // pred_fallthru
      _
    // Predicated region
    $region14: #{tpu_custom_call.1} parent=1 // pred_check
      _
    $region15: #{tpu_custom_call.1} parent=1 // pred_check_branch
      %31 = sbr.rel (0) target = $region17
    $region16: #{tpu_custom_call.1} parent=1 // pred_region
      %s33 = ssub.s32 1024, 1024
      %34 = vsyncadd [#allocation5], %s33
      %s35 = sshll.u32 [#allocation4], 4
      %s36 = int_to_ptr.vmem [resolvable:$true] %s35
      %41 = dma.hbm_to_vmem [thread:$0]  %s3, 1024, %s36, [#allocation5], 64, 64, 4
    $region17: #{tpu_custom_call.1} parent=1 // pred_fallthru
      _
    // Predicated region
    $region18: #{tpu_custom_call.1} parent=1 // pred_check
      _
    $region19: #{tpu_custom_call.1} parent=1 // pred_check_branch
      %43 = sbr.rel (0) target = $region21
    $region20: #{tpu_custom_call.1} parent=1 // pred_region
      _
    $region21: #{tpu_custom_call.1} parent=1 // pred_fallthru
      _
    // Predicated region
    $region22: #{tpu_custom_call.1} parent=1 // pred_check
      _
    $region23: #{tpu_custom_call.1} parent=1 // pred_check_branch
      %45 = sbr.rel (0) target = $region25
    $region24: #{tpu_custom_call.1} parent=1 // pred_region
      _
    $region25: #{tpu_custom_call.1} parent=1 // pred_fallthru
      _
    // Predicated region
    $region26: #{tpu_custom_call.1} parent=1 // pred_check
      _
    $region27: #{tpu_custom_call.1} parent=1 // pred_check_branch
      %47 = sbr.rel (0) target = $region29
    $region28: #{tpu_custom_call.1} parent=1 // pred_region
      _
    $region29: #{tpu_custom_call.1} parent=1 // pred_fallthru
      _
    // Predicated region
    $region30: #{tpu_custom_call.1} parent=1 // pred_check
      _
    $region31: #{tpu_custom_call.1} parent=1 // pred_check_branch
      %49 = sbr.rel (0) target = $region33
    $region32: #{tpu_custom_call.1} parent=1 // pred_region
      %50 = dma.done [#allocation3], 8192
    $region33: #{tpu_custom_call.1} parent=1 // pred_fallthru
      _
    // Predicated region
    $region34: #{tpu_custom_call.1} parent=1 // pred_check
      _
    $region35: #{tpu_custom_call.1} parent=1 // pred_check_branch
      %52 = sbr.rel (0) target = $region37
    $region36: #{tpu_custom_call.1} parent=1 // pred_region
      %53 = dma.done [#allocation5], 1024
    $region37: #{tpu_custom_call.1} parent=1 // pred_fallthru
      _
    %v55 = vld [vmem:[%s0] sm:$0xff]
    %v56 = vld [vmem:[%s0 + $0x8] sm:$0xff]
    %v57 = vld [vmem:[%s0 + $0x10] sm:$0xff]
    %v58 = vld [vmem:[%s0 + $0x18] sm:$0xff]
    %v59 = vld [vmem:[%s0 + $0x20] sm:$0xff]
    %v60 = vld [vmem:[%s0 + $0x28] sm:$0xff]
    %v61 = vld [vmem:[%s0 + $0x30] sm:$0xff]
    %v62 = vld [vmem:[%s0 + $0x38] sm:$0xff]
    %v63 = vpack.c.bf16 %v55, %v55
    %v64 = vpack.c.bf16 %v56, %v56
    %v65 = vpack.c.bf16 %v57, %v57
    %v66 = vpack.c.bf16 %v58, %v58
    %v67 = vpack.c.bf16 %v59, %v59
    %v68 = vpack.c.bf16 %v60, %v60
    %v69 = vpack.c.bf16 %v61, %v61
    %v70 = vpack.c.bf16 %v62, %v62
    %v71 = vld [vmem:[#allocation2] sm:$0xf]
    %v72 = vld [vmem:[#allocation2 + $0x4] sm:$0xf]
    %v73 = vld [vmem:[#allocation2 + $0x8] sm:$0xf]
    %v74 = vld [vmem:[#allocation2 + $0xc] sm:$0xf]
    %v75 = vld [vmem:[#allocation2 + $0x10] sm:$0xf]
    %v76 = vld [vmem:[#allocation2 + $0x14] sm:$0xf]
    %v77 = vld [vmem:[#allocation2 + $0x18] sm:$0xf]
    %v78 = vld [vmem:[#allocation2 + $0x1c] sm:$0xf]
    %v79 = vld [vmem:[#allocation2 + $0x20] sm:$0xf]
    %v80 = vld [vmem:[#allocation2 + $0x24] sm:$0xf]
    %v81 = vld [vmem:[#allocation2 + $0x28] sm:$0xf]
    %v82 = vld [vmem:[#allocation2 + $0x2c] sm:$0xf]
    %v83 = vld [vmem:[#allocation2 + $0x30] sm:$0xf]
    %v84 = vld [vmem:[#allocation2 + $0x34] sm:$0xf]
    %v85 = vld [vmem:[#allocation2 + $0x38] sm:$0xf]
    %v86 = vld [vmem:[#allocation2 + $0x3c] sm:$0xf]
    %v87 = vld [vmem:[#allocation2 + $0x40] sm:$0xf]
    %v88 = vld [vmem:[#allocation2 + $0x44] sm:$0xf]
    %v89 = vld [vmem:[#allocation2 + $0x48] sm:$0xf]
    %v90 = vld [vmem:[#allocation2 + $0x4c] sm:$0xf]
    %v91 = vld [vmem:[#allocation2 + $0x50] sm:$0xf]
    %v92 = vld [vmem:[#allocation2 + $0x54] sm:$0xf]
    %v93 = vld [vmem:[#allocation2 + $0x58] sm:$0xf]
    %v94 = vld [vmem:[#allocation2 + $0x5c] sm:$0xf]
    %v95 = vld [vmem:[#allocation2 + $0x60] sm:$0xf]
    %v96 = vld [vmem:[#allocation2 + $0x64] sm:$0xf]
    %v97 = vld [vmem:[#allocation2 + $0x68] sm:$0xf]
    %v98 = vld [vmem:[#allocation2 + $0x6c] sm:$0xf]
    %v99 = vld [vmem:[#allocation2 + $0x70] sm:$0xf]
    %v100 = vld [vmem:[#allocation2 + $0x74] sm:$0xf]
    %v101 = vld [vmem:[#allocation2 + $0x78] sm:$0xf]
    %v102 = vld [vmem:[#allocation2 + $0x7c] sm:$0xf]
    %v103 = vld [vmem:[#allocation2 + $0x80] sm:$0xf]
    %v104 = vld [vmem:[#allocation2 + $0x84] sm:$0xf]
    %v105 = vld [vmem:[#allocation2 + $0x88] sm:$0xf]
    %v106 = vld [vmem:[#allocation2 + $0x8c] sm:$0xf]
    %v107 = vld [vmem:[#allocation2 + $0x90] sm:$0xf]
    %v108 = vld [vmem:[#allocation2 + $0x94] sm:$0xf]
    %v109 = vld [vmem:[#allocation2 + $0x98] sm:$0xf]
    %v110 = vld [vmem:[#allocation2 + $0x9c] sm:$0xf]
    %v111 = vld [vmem:[#allocation2 + $0xa0] sm:$0xf]
    %v112 = vld [vmem:[#allocation2 + $0xa4] sm:$0xf]
    %v113 = vld [vmem:[#allocation2 + $0xa8] sm:$0xf]
    %v114 = vld [vmem:[#allocation2 + $0xac] sm:$0xf]
    %v115 = vld [vmem:[#allocation2 + $0xb0] sm:$0xf]
    %v116 = vld [vmem:[#allocation2 + $0xb4] sm:$0xf]
    %v117 = vld [vmem:[#allocation2 + $0xb8] sm:$0xf]
    %v118 = vld [vmem:[#allocation2 + $0xbc] sm:$0xf]
    %v119 = vld [vmem:[#allocation2 + $0xc0] sm:$0xf]
    %v120 = vld [vmem:[#allocation2 + $0xc4] sm:$0xf]
    %v121 = vld [vmem:[#allocation2 + $0xc8] sm:$0xf]
    %v122 = vld [vmem:[#allocation2 + $0xcc] sm:$0xf]
    %v123 = vld [vmem:[#allocation2 + $0xd0] sm:$0xf]
    %v124 = vld [vmem:[#allocation2 + $0xd4] sm:$0xf]
    %v125 = vld [vmem:[#allocation2 + $0xd8] sm:$0xf]
    %v126 = vld [vmem:[#allocation2 + $0xdc] sm:$0xf]
    %v127 = vld [vmem:[#allocation2 + $0xe0] sm:$0xf]
    %v128 = vld [vmem:[#allocation2 + $0xe4] sm:$0xf]
    %v129 = vld [vmem:[#allocation2 + $0xe8] sm:$0xf]
    %v130 = vld [vmem:[#allocation2 + $0xec] sm:$0xf]
    %v131 = vld [vmem:[#allocation2 + $0xf0] sm:$0xf]
    %v132 = vld [vmem:[#allocation2 + $0xf4] sm:$0xf]
    %v133 = vld [vmem:[#allocation2 + $0xf8] sm:$0xf]
    %v134 = vld [vmem:[#allocation2 + $0xfc] sm:$0xf]
    %v135 = vld [vmem:[#allocation2 + $0x100] sm:$0xf]
    %v136 = vld [vmem:[#allocation2 + $0x104] sm:$0xf]
    %v137 = vld [vmem:[#allocation2 + $0x108] sm:$0xf]
    %v138 = vld [vmem:[#allocation2 + $0x10c] sm:$0xf]
    %v139 = vld [vmem:[#allocation2 + $0x110] sm:$0xf]
    %v140 = vld [vmem:[#allocation2 + $0x114] sm:$0xf]
    %v141 = vld [vmem:[#allocation2 + $0x118] sm:$0xf]
    %v142 = vld [vmem:[#allocation2 + $0x11c] sm:$0xf]
    %v143 = vld [vmem:[#allocation2 + $0x120] sm:$0xf]
    %v144 = vld [vmem:[#allocation2 + $0x124] sm:$0xf]
    %v145 = vld [vmem:[#allocation2 + $0x128] sm:$0xf]
    %v146 = vld [vmem:[#allocation2 + $0x12c] sm:$0xf]
    %v147 = vld [vmem:[#allocation2 + $0x130] sm:$0xf]
    %v148 = vld [vmem:[#allocation2 + $0x134] sm:$0xf]
    %v149 = vld [vmem:[#allocation2 + $0x138] sm:$0xf]
    %v150 = vld [vmem:[#allocation2 + $0x13c] sm:$0xf]
    %v151 = vld [vmem:[#allocation2 + $0x140] sm:$0xf]
    %v152 = vld [vmem:[#allocation2 + $0x144] sm:$0xf]
    %v153 = vld [vmem:[#allocation2 + $0x148] sm:$0xf]
    %v154 = vld [vmem:[#allocation2 + $0x14c] sm:$0xf]
    %v155 = vld [vmem:[#allocation2 + $0x150] sm:$0xf]
    %v156 = vld [vmem:[#allocation2 + $0x154] sm:$0xf]
    %v157 = vld [vmem:[#allocation2 + $0x158] sm:$0xf]
    %v158 = vld [vmem:[#allocation2 + $0x15c] sm:$0xf]
    %v159 = vld [vmem:[#allocation2 + $0x160] sm:$0xf]
    %v160 = vld [vmem:[#allocation2 + $0x164] sm:$0xf]
    %v161 = vld [vmem:[#allocation2 + $0x168] sm:$0xf]
    %v162 = vld [vmem:[#allocation2 + $0x16c] sm:$0xf]
    %v163 = vld [vmem:[#allocation2 + $0x170] sm:$0xf]
    %v164 = vld [vmem:[#allocation2 + $0x174] sm:$0xf]
    %v165 = vld [vmem:[#allocation2 + $0x178] sm:$0xf]
    %v166 = vld [vmem:[#allocation2 + $0x17c] sm:$0xf]
    %v167 = vld [vmem:[#allocation2 + $0x180] sm:$0xf]
    %v168 = vld [vmem:[#allocation2 + $0x184] sm:$0xf]
    %v169 = vld [vmem:[#allocation2 + $0x188] sm:$0xf]
    %v170 = vld [vmem:[#allocation2 + $0x18c] sm:$0xf]
    %v171 = vld [vmem:[#allocation2 + $0x190] sm:$0xf]
    %v172 = vld [vmem:[#allocation2 + $0x194] sm:$0xf]
    %v173 = vld [vmem:[#allocation2 + $0x198] sm:$0xf]
    %v174 = vld [vmem:[#allocation2 + $0x19c] sm:$0xf]
    %v175 = vld [vmem:[#allocation2 + $0x1a0] sm:$0xf]
    %v176 = vld [vmem:[#allocation2 + $0x1a4] sm:$0xf]
    %v177 = vld [vmem:[#allocation2 + $0x1a8] sm:$0xf]
    %v178 = vld [vmem:[#allocation2 + $0x1ac] sm:$0xf]
    %v179 = vld [vmem:[#allocation2 + $0x1b0] sm:$0xf]
    %v180 = vld [vmem:[#allocation2 + $0x1b4] sm:$0xf]
    %v181 = vld [vmem:[#allocation2 + $0x1b8] sm:$0xf]
    %v182 = vld [vmem:[#allocation2 + $0x1bc] sm:$0xf]
    %v183 = vld [vmem:[#allocation2 + $0x1c0] sm:$0xf]
    %v184 = vld [vmem:[#allocation2 + $0x1c4] sm:$0xf]
    %v185 = vld [vmem:[#allocation2 + $0x1c8] sm:$0xf]
    %v186 = vld [vmem:[#allocation2 + $0x1cc] sm:$0xf]
    %v187 = vld [vmem:[#allocation2 + $0x1d0] sm:$0xf]
    %v188 = vld [vmem:[#allocation2 + $0x1d4] sm:$0xf]
    %v189 = vld [vmem:[#allocation2 + $0x1d8] sm:$0xf]
    %v190 = vld [vmem:[#allocation2 + $0x1dc] sm:$0xf]
    %v191 = vld [vmem:[#allocation2 + $0x1e0] sm:$0xf]
    %v192 = vld [vmem:[#allocation2 + $0x1e4] sm:$0xf]
    %v193 = vld [vmem:[#allocation2 + $0x1e8] sm:$0xf]
    %v194 = vld [vmem:[#allocation2 + $0x1ec] sm:$0xf]
    %v195 = vld [vmem:[#allocation2 + $0x1f0] sm:$0xf]
    %v196 = vld [vmem:[#allocation2 + $0x1f4] sm:$0xf]
    %v197 = vld [vmem:[#allocation2 + $0x1f8] sm:$0xf]
    %v198 = vld [vmem:[#allocation2 + $0x1fc] sm:$0xf]
    %v199 = vld [vmem:[%s2] sm:$0x1]
    %v201 = vlaneseq
    %v202 = vshrl.u32 %v201, 7
    %v203 = vsub.s32 0, %v202
    %v204 = vrot.slane %v199, %v203
    %v334 = vunpack.c.l.b16 %v71
    %v335 = vunpack.c.l.b16 %v72
    %v336 = vunpack.c.l.b16 %v73
    %v337 = vunpack.c.l.b16 %v74
    %v338 = vunpack.c.l.b16 %v75
    %v339 = vunpack.c.l.b16 %v76
    %v340 = vunpack.c.l.b16 %v77
    %v341 = vunpack.c.l.b16 %v78
    %v342 = vunpack.c.l.b16 %v79
    %v343 = vunpack.c.l.b16 %v80
    %v344 = vunpack.c.l.b16 %v81
    %v345 = vunpack.c.l.b16 %v82
    %v346 = vunpack.c.l.b16 %v83
    %v347 = vunpack.c.l.b16 %v84
    %v348 = vunpack.c.l.b16 %v85
    %v349 = vunpack.c.l.b16 %v86
    %v350 = vunpack.c.l.b16 %v87
    %v351 = vunpack.c.l.b16 %v88
    %v352 = vunpack.c.l.b16 %v89
    %v353 = vunpack.c.l.b16 %v90
    %v354 = vunpack.c.l.b16 %v91
    %v355 = vunpack.c.l.b16 %v92
    %v356 = vunpack.c.l.b16 %v93
    %v357 = vunpack.c.l.b16 %v94
    %v358 = vunpack.c.l.b16 %v95
    %v359 = vunpack.c.l.b16 %v96
    %v360 = vunpack.c.l.b16 %v97
    %v361 = vunpack.c.l.b16 %v98
    %v362 = vunpack.c.l.b16 %v99
    %v363 = vunpack.c.l.b16 %v100
    %v364 = vunpack.c.l.b16 %v101
    %v365 = vunpack.c.l.b16 %v102
    %v366 = vunpack.c.l.b16 %v103
    %v367 = vunpack.c.l.b16 %v104
    %v368 = vunpack.c.l.b16 %v105
    %v369 = vunpack.c.l.b16 %v106
    %v370 = vunpack.c.l.b16 %v107
    %v371 = vunpack.c.l.b16 %v108
    %v372 = vunpack.c.l.b16 %v109
    %v373 = vunpack.c.l.b16 %v110
    %v374 = vunpack.c.l.b16 %v111
    %v375 = vunpack.c.l.b16 %v112
    %v376 = vunpack.c.l.b16 %v113
    %v377 = vunpack.c.l.b16 %v114
    %v378 = vunpack.c.l.b16 %v115
    %v379 = vunpack.c.l.b16 %v116
    %v380 = vunpack.c.l.b16 %v117
    %v381 = vunpack.c.l.b16 %v118
    %v382 = vunpack.c.l.b16 %v119
    %v383 = vunpack.c.l.b16 %v120
    %v384 = vunpack.c.l.b16 %v121
    %v385 = vunpack.c.l.b16 %v122
    %v386 = vunpack.c.l.b16 %v123
    %v387 = vunpack.c.l.b16 %v124
    %v388 = vunpack.c.l.b16 %v125
    %v389 = vunpack.c.l.b16 %v126
    %v390 = vunpack.c.l.b16 %v127
    %v391 = vunpack.c.l.b16 %v128
    %v392 = vunpack.c.l.b16 %v129
    %v393 = vunpack.c.l.b16 %v130
    %v394 = vunpack.c.l.b16 %v131
    %v395 = vunpack.c.l.b16 %v132
    %v396 = vunpack.c.l.b16 %v133
    %v397 = vunpack.c.l.b16 %v134
    %v398 = vunpack.c.l.b16 %v135
    %v399 = vunpack.c.l.b16 %v136
    %v400 = vunpack.c.l.b16 %v137
    %v401 = vunpack.c.l.b16 %v138
    %v402 = vunpack.c.l.b16 %v139
    %v403 = vunpack.c.l.b16 %v140
    %v404 = vunpack.c.l.b16 %v141
    %v405 = vunpack.c.l.b16 %v142
    %v406 = vunpack.c.l.b16 %v143
    %v407 = vunpack.c.l.b16 %v144
    %v408 = vunpack.c.l.b16 %v145
    %v409 = vunpack.c.l.b16 %v146
    %v410 = vunpack.c.l.b16 %v147
    %v411 = vunpack.c.l.b16 %v148
    %v412 = vunpack.c.l.b16 %v149
    %v413 = vunpack.c.l.b16 %v150
    %v414 = vunpack.c.l.b16 %v151
    %v415 = vunpack.c.l.b16 %v152
    %v416 = vunpack.c.l.b16 %v153
    %v417 = vunpack.c.l.b16 %v154
    %v418 = vunpack.c.l.b16 %v155
    %v419 = vunpack.c.l.b16 %v156
    %v420 = vunpack.c.l.b16 %v157
    %v421 = vunpack.c.l.b16 %v158
    %v422 = vunpack.c.l.b16 %v159
    %v423 = vunpack.c.l.b16 %v160
    %v424 = vunpack.c.l.b16 %v161
    %v425 = vunpack.c.l.b16 %v162
    %v426 = vunpack.c.l.b16 %v163
    %v427 = vunpack.c.l.b16 %v164
    %v428 = vunpack.c.l.b16 %v165
    %v429 = vunpack.c.l.b16 %v166
    %v430 = vunpack.c.l.b16 %v167
    %v431 = vunpack.c.l.b16 %v168
    %v432 = vunpack.c.l.b16 %v169
    %v433 = vunpack.c.l.b16 %v170
    %v434 = vunpack.c.l.b16 %v171
    %v435 = vunpack.c.l.b16 %v172
    %v436 = vunpack.c.l.b16 %v173
    %v437 = vunpack.c.l.b16 %v174
    %v438 = vunpack.c.l.b16 %v175
    %v439 = vunpack.c.l.b16 %v176
    %v440 = vunpack.c.l.b16 %v177
    %v441 = vunpack.c.l.b16 %v178
    %v442 = vunpack.c.l.b16 %v179
    %v443 = vunpack.c.l.b16 %v180
    %v444 = vunpack.c.l.b16 %v181
    %v445 = vunpack.c.l.b16 %v182
    %v446 = vunpack.c.l.b16 %v183
    %v447 = vunpack.c.l.b16 %v184
    %v448 = vunpack.c.l.b16 %v185
    %v449 = vunpack.c.l.b16 %v186
    %v450 = vunpack.c.l.b16 %v187
    %v451 = vunpack.c.l.b16 %v188
    %v452 = vunpack.c.l.b16 %v189
    %v453 = vunpack.c.l.b16 %v190
    %v454 = vunpack.c.l.b16 %v191
    %v455 = vunpack.c.l.b16 %v192
    %v456 = vunpack.c.l.b16 %v193
    %v457 = vunpack.c.l.b16 %v194
    %v458 = vunpack.c.l.b16 %v195
    %v459 = vunpack.c.l.b16 %v196
    %v460 = vunpack.c.l.b16 %v197
    %v461 = vunpack.c.l.b16 %v198
    %v462 = vpack.c.b16 %v335, %v334
    %v463 = vpack.c.b16 %v337, %v336
    %v464 = vpack.c.b16 %v339, %v338
    %v465 = vpack.c.b16 %v341, %v340
    %v466 = vpack.c.b16 %v343, %v342
    %v467 = vpack.c.b16 %v345, %v344
    %v468 = vpack.c.b16 %v347, %v346
    %v469 = vpack.c.b16 %v349, %v348
    %v470 = vpack.c.b16 %v351, %v350
    %v471 = vpack.c.b16 %v353, %v352
    %v472 = vpack.c.b16 %v355, %v354
    %v473 = vpack.c.b16 %v357, %v356
    %v474 = vpack.c.b16 %v359, %v358
    %v475 = vpack.c.b16 %v361, %v360
    %v476 = vpack.c.b16 %v363, %v362
    %v477 = vpack.c.b16 %v365, %v364
    %v478 = vpack.c.b16 %v367, %v366
    %v479 = vpack.c.b16 %v369, %v368
    %v480 = vpack.c.b16 %v371, %v370
    %v481 = vpack.c.b16 %v373, %v372
    %v482 = vpack.c.b16 %v375, %v374
    %v483 = vpack.c.b16 %v377, %v376
    %v484 = vpack.c.b16 %v379, %v378
    %v485 = vpack.c.b16 %v381, %v380
    %v486 = vpack.c.b16 %v383, %v382
    %v487 = vpack.c.b16 %v385, %v384
    %v488 = vpack.c.b16 %v387, %v386
    %v489 = vpack.c.b16 %v389, %v388
    %v490 = vpack.c.b16 %v391, %v390
    %v491 = vpack.c.b16 %v393, %v392
    %v492 = vpack.c.b16 %v395, %v394
    %v493 = vpack.c.b16 %v397, %v396
    %v494 = vpack.c.b16 %v399, %v398
    %v495 = vpack.c.b16 %v401, %v400
    %v496 = vpack.c.b16 %v403, %v402
    %v497 = vpack.c.b16 %v405, %v404
    %v498 = vpack.c.b16 %v407, %v406
    %v499 = vpack.c.b16 %v409, %v408
    %v500 = vpack.c.b16 %v411, %v410
    %v501 = vpack.c.b16 %v413, %v412
    %v502 = vpack.c.b16 %v415, %v414
    %v503 = vpack.c.b16 %v417, %v416
    %v504 = vpack.c.b16 %v419, %v418
    %v505 = vpack.c.b16 %v421, %v420
    %v506 = vpack.c.b16 %v423, %v422
    %v507 = vpack.c.b16 %v425, %v424
    %v508 = vpack.c.b16 %v427, %v426
    %v509 = vpack.c.b16 %v429, %v428
    %v510 = vpack.c.b16 %v431, %v430
    %v511 = vpack.c.b16 %v433, %v432
    %v512 = vpack.c.b16 %v435, %v434
    %v513 = vpack.c.b16 %v437, %v436
    %v514 = vpack.c.b16 %v439, %v438
    %v515 = vpack.c.b16 %v441, %v440
    %v516 = vpack.c.b16 %v443, %v442
    %v517 = vpack.c.b16 %v445, %v444
    %v518 = vpack.c.b16 %v447, %v446
    %v519 = vpack.c.b16 %v449, %v448
    %v520 = vpack.c.b16 %v451, %v450
    %v521 = vpack.c.b16 %v453, %v452
    %v522 = vpack.c.b16 %v455, %v454
    %v523 = vpack.c.b16 %v457, %v456
    %v524 = vpack.c.b16 %v459, %v458
    %v525 = vpack.c.b16 %v461, %v460
    %590 = vmatprep.subr.bf16.mxu0 0
    %591 = vmatpush1.bf16.msra.mxu0 %v462
    %592 = vmatprep.subr.bf16.mxu0 0
    %593 = vmatpush1.bf16.msra.mxu0 %v463
    %594 = vmatprep.subr.bf16.mxu0 0
    %595 = vmatpush1.bf16.msra.mxu0 %v464
    %596 = vmatprep.subr.bf16.mxu0 0
    %597 = vmatpush1.bf16.msra.mxu0 %v465
    %598 = vmatprep.subr.bf16.mxu0 0
    %599 = vmatpush1.bf16.msra.mxu0 %v466
    %600 = vmatprep.subr.bf16.mxu0 0
    %601 = vmatpush1.bf16.msra.mxu0 %v467
    %602 = vmatprep.subr.bf16.mxu0 0
    %603 = vmatpush1.bf16.msra.mxu0 %v468
    %604 = vmatprep.subr.bf16.mxu0 0
    %605 = vmatpush1.bf16.msra.mxu0 %v469
    %606 = vmatprep.subr.bf16.mxu0 0
    %607 = vmatpush1.bf16.msra.mxu0 %v470
    %608 = vmatprep.subr.bf16.mxu0 0
    %609 = vmatpush1.bf16.msra.mxu0 %v471
    %610 = vmatprep.subr.bf16.mxu0 0
    %611 = vmatpush1.bf16.msra.mxu0 %v472
    %612 = vmatprep.subr.bf16.mxu0 0
    %613 = vmatpush1.bf16.msra.mxu0 %v473
    %614 = vmatprep.subr.bf16.mxu0 0
    %615 = vmatpush1.bf16.msra.mxu0 %v474
    %616 = vmatprep.subr.bf16.mxu0 0
    %617 = vmatpush1.bf16.msra.mxu0 %v475
    %618 = vmatprep.subr.bf16.mxu0 0
    %619 = vmatpush1.bf16.msra.mxu0 %v476
    %620 = vmatprep.subr.bf16.mxu0 0
    %621 = vmatpush1.bf16.msra.mxu0 %v477
    %622 = vmatprep.mubr.bf16.mxu0 %v64
    %623 = vmatmul.mubr.bf16.gmra.mrb[0].mxu0 %v63
    %v624 = vpop.f32.mrb[0].mxu0
    %v625 = vadd.f32 %v204, %v624
    %v626 = vpop.f32.mrb[0].mxu0
    %v627 = vpop.f32.mrb[0].mxu0
    %v628 = vpop.f32.mrb[0].mxu0
    %629 = vdwg.mxu0
    %630 = vmatprep.subr.bf16.mxu0 0
    %631 = vmatpush1.bf16.msra.mxu0 %v478
    %632 = vmatprep.subr.bf16.mxu0 0
    %633 = vmatpush1.bf16.msra.mxu0 %v479
    %634 = vmatprep.subr.bf16.mxu0 0
    %635 = vmatpush1.bf16.msra.mxu0 %v480
    %636 = vmatprep.subr.bf16.mxu0 0
    %637 = vmatpush1.bf16.msra.mxu0 %v481
    %638 = vmatprep.subr.bf16.mxu0 0
    %639 = vmatpush1.bf16.msra.mxu0 %v482
    %640 = vmatprep.subr.bf16.mxu0 0
    %641 = vmatpush1.bf16.msra.mxu0 %v483
    %642 = vmatprep.subr.bf16.mxu0 0
    %643 = vmatpush1.bf16.msra.mxu0 %v484
    %644 = vmatprep.subr.bf16.mxu0 0
    %645 = vmatpush1.bf16.msra.mxu0 %v485
    %646 = vmatprep.subr.bf16.mxu0 0
    %647 = vmatpush1.bf16.msra.mxu0 %v486
    %648 = vmatprep.subr.bf16.mxu0 0
    %649 = vmatpush1.bf16.msra.mxu0 %v487
    %650 = vmatprep.subr.bf16.mxu0 0
    %651 = vmatpush1.bf16.msra.mxu0 %v488
    %652 = vmatprep.subr.bf16.mxu0 0
    %653 = vmatpush1.bf16.msra.mxu0 %v489
    %654 = vmatprep.subr.bf16.mxu0 0
    %655 = vmatpush1.bf16.msra.mxu0 %v490
    %656 = vmatprep.subr.bf16.mxu0 0
    %657 = vmatpush1.bf16.msra.mxu0 %v491
    %658 = vmatprep.subr.bf16.mxu0 0
    %659 = vmatpush1.bf16.msra.mxu0 %v492
    %660 = vmatprep.subr.bf16.mxu0 0
    %661 = vmatpush1.bf16.msra.mxu0 %v493
    %662 = vmatprep.mubr.bf16.mxu0 %v66
    %663 = vmatmul.mubr.bf16.gmra.mrb[0].mxu0 %v65
    %v664 = vpop.f32.mrb[0].mxu0
    %v665 = vadd.f32 %v625, %v664
    %v666 = vpop.f32.mrb[0].mxu0
    %v667 = vpop.f32.mrb[0].mxu0
    %v668 = vpop.f32.mrb[0].mxu0
    %669 = vdwg.mxu0
    %670 = vmatprep.subr.bf16.mxu0 0
    %671 = vmatpush1.bf16.msra.mxu0 %v494
    %672 = vmatprep.subr.bf16.mxu0 0
    %673 = vmatpush1.bf16.msra.mxu0 %v495
    %674 = vmatprep.subr.bf16.mxu0 0
    %675 = vmatpush1.bf16.msra.mxu0 %v496
    %676 = vmatprep.subr.bf16.mxu0 0
    %677 = vmatpush1.bf16.msra.mxu0 %v497
    %678 = vmatprep.subr.bf16.mxu0 0
    %679 = vmatpush1.bf16.msra.mxu0 %v498
    %680 = vmatprep.subr.bf16.mxu0 0
    %681 = vmatpush1.bf16.msra.mxu0 %v499
    %682 = vmatprep.subr.bf16.mxu0 0
    %683 = vmatpush1.bf16.msra.mxu0 %v500
    %684 = vmatprep.subr.bf16.mxu0 0
    %685 = vmatpush1.bf16.msra.mxu0 %v501
    %686 = vmatprep.subr.bf16.mxu0 0
    %687 = vmatpush1.bf16.msra.mxu0 %v502
    %688 = vmatprep.subr.bf16.mxu0 0
    %689 = vmatpush1.bf16.msra.mxu0 %v503
    %690 = vmatprep.subr.bf16.mxu0 0
    %691 = vmatpush1.bf16.msra.mxu0 %v504
    %692 = vmatprep.subr.bf16.mxu0 0
    %693 = vmatpush1.bf16.msra.mxu0 %v505
    %694 = vmatprep.subr.bf16.mxu0 0
    %695 = vmatpush1.bf16.msra.mxu0 %v506
    %696 = vmatprep.subr.bf16.mxu0 0
    %697 = vmatpush1.bf16.msra.mxu0 %v507
    %698 = vmatprep.subr.bf16.mxu0 0
    %699 = vmatpush1.bf16.msra.mxu0 %v508
    %700 = vmatprep.subr.bf16.mxu0 0
    %701 = vmatpush1.bf16.msra.mxu0 %v509
    %702 = vmatprep.mubr.bf16.mxu0 %v68
    %703 = vmatmul.mubr.bf16.gmra.mrb[0].mxu0 %v67
    %v704 = vpop.f32.mrb[0].mxu0
    %v705 = vadd.f32 %v665, %v704
    %v706 = vpop.f32.mrb[0].mxu0
    %v707 = vpop.f32.mrb[0].mxu0
    %v708 = vpop.f32.mrb[0].mxu0
    %709 = vdwg.mxu0
    %710 = vmatprep.subr.bf16.mxu0 0
    %711 = vmatpush1.bf16.msra.mxu0 %v510
    %712 = vmatprep.subr.bf16.mxu0 0
    %713 = vmatpush1.bf16.msra.mxu0 %v511
    %714 = vmatprep.subr.bf16.mxu0 0
    %715 = vmatpush1.bf16.msra.mxu0 %v512
    %716 = vmatprep.subr.bf16.mxu0 0
    %717 = vmatpush1.bf16.msra.mxu0 %v513
    %718 = vmatprep.subr.bf16.mxu0 0
    %719 = vmatpush1.bf16.msra.mxu0 %v514
    %720 = vmatprep.subr.bf16.mxu0 0
    %721 = vmatpush1.bf16.msra.mxu0 %v515
    %722 = vmatprep.subr.bf16.mxu0 0
    %723 = vmatpush1.bf16.msra.mxu0 %v516
    %724 = vmatprep.subr.bf16.mxu0 0
    %725 = vmatpush1.bf16.msra.mxu0 %v517
    %726 = vmatprep.subr.bf16.mxu0 0
    %727 = vmatpush1.bf16.msra.mxu0 %v518
    %728 = vmatprep.subr.bf16.mxu0 0
    %729 = vmatpush1.bf16.msra.mxu0 %v519
    %730 = vmatprep.subr.bf16.mxu0 0
    %731 = vmatpush1.bf16.msra.mxu0 %v520
    %732 = vmatprep.subr.bf16.mxu0 0
    %733 = vmatpush1.bf16.msra.mxu0 %v521
    %734 = vmatprep.subr.bf16.mxu0 0
    %735 = vmatpush1.bf16.msra.mxu0 %v522
    %736 = vmatprep.subr.bf16.mxu0 0
    %737 = vmatpush1.bf16.msra.mxu0 %v523
    %738 = vmatprep.subr.bf16.mxu0 0
    %739 = vmatpush1.bf16.msra.mxu0 %v524
    %740 = vmatprep.subr.bf16.mxu0 0
    %741 = vmatpush1.bf16.msra.mxu0 %v525
    %742 = vmatprep.mubr.bf16.mxu0 %v70
    %743 = vmatmul.mubr.bf16.gmra.mrb[0].mxu0 %v69
    %v744 = vpop.f32.mrb[0].mxu0
    %v745 = vadd.f32 %v705, %v744
    %v746 = vpop.f32.mrb[0].mxu0
    %v747 = vpop.f32.mrb[0].mxu0
    %v748 = vpop.f32.mrb[0].mxu0
    %749 = vdwg.mxu0
    %v750 = vmax.f32 %v745, 0.0
    %v751 = vpack.c.bf16 %v750, %v750
    %v752 = vld [vmem:[#allocation4] sm:$0xf]
    %v753 = vld [vmem:[#allocation4 + $0x4] sm:$0xf]
    %v754 = vld [vmem:[#allocation4 + $0x8] sm:$0xf]
    %v755 = vld [vmem:[#allocation4 + $0xc] sm:$0xf]
    %v756 = vld [vmem:[#allocation4 + $0x10] sm:$0xf]
    %v757 = vld [vmem:[#allocation4 + $0x14] sm:$0xf]
    %v758 = vld [vmem:[#allocation4 + $0x18] sm:$0xf]
    %v759 = vld [vmem:[#allocation4 + $0x1c] sm:$0xf]
    %v760 = vld [vmem:[#allocation4 + $0x20] sm:$0xf]
    %v761 = vld [vmem:[#allocation4 + $0x24] sm:$0xf]
    %v762 = vld [vmem:[#allocation4 + $0x28] sm:$0xf]
    %v763 = vld [vmem:[#allocation4 + $0x2c] sm:$0xf]
    %v764 = vld [vmem:[#allocation4 + $0x30] sm:$0xf]
    %v765 = vld [vmem:[#allocation4 + $0x34] sm:$0xf]
    %v766 = vld [vmem:[#allocation4 + $0x38] sm:$0xf]
    %v767 = vld [vmem:[#allocation4 + $0x3c] sm:$0xf]
    %v768 = vld [vmem:[%s4] sm:$0x1]
    %v770 = vlaneseq
    %v771 = vshrl.u32 %v770, 7
    %v772 = vsub.s32 0, %v771
    %v773 = vrot.slane %v768, %v772
    %v791 = vunpack.c.l.b16 %v752
    %v792 = vunpack.c.l.b16 %v753
    %v793 = vunpack.c.l.b16 %v754
    %v794 = vunpack.c.l.b16 %v755
    %v795 = vunpack.c.l.b16 %v756
    %v796 = vunpack.c.l.b16 %v757
    %v797 = vunpack.c.l.b16 %v758
    %v798 = vunpack.c.l.b16 %v759
    %v799 = vunpack.c.l.b16 %v760
    %v800 = vunpack.c.l.b16 %v761
    %v801 = vunpack.c.l.b16 %v762
    %v802 = vunpack.c.l.b16 %v763
    %v803 = vunpack.c.l.b16 %v764
    %v804 = vunpack.c.l.b16 %v765
    %v805 = vunpack.c.l.b16 %v766
    %v806 = vunpack.c.l.b16 %v767
    %v807 = vpack.c.b16 %v792, %v791
    %v808 = vpack.c.b16 %v794, %v793
    %v809 = vpack.c.b16 %v796, %v795
    %v810 = vpack.c.b16 %v798, %v797
    %v811 = vpack.c.b16 %v800, %v799
    %v812 = vpack.c.b16 %v802, %v801
    %v813 = vpack.c.b16 %v804, %v803
    %v814 = vpack.c.b16 %v806, %v805
    %823 = vmatprep.subr.bf16.mxu0 0
    %824 = vmatpush1.bf16.msra.mxu0 %v807
    %825 = vmatprep.subr.bf16.mxu0 0
    %826 = vmatpush1.bf16.msra.mxu0 %v808
    %827 = vmatprep.subr.bf16.mxu0 0
    %828 = vmatpush1.bf16.msra.mxu0 %v809
    %829 = vmatprep.subr.bf16.mxu0 0
    %830 = vmatpush1.bf16.msra.mxu0 %v810
    %831 = vmatprep.subr.bf16.mxu0 0
    %832 = vmatpush1.bf16.msra.mxu0 %v811
    %833 = vmatprep.subr.bf16.mxu0 0
    %834 = vmatpush1.bf16.msra.mxu0 %v812
    %835 = vmatprep.subr.bf16.mxu0 0
    %836 = vmatpush1.bf16.msra.mxu0 %v813
    %837 = vmatprep.subr.bf16.mxu0 0
    %838 = vmatpush1.bf16.msra.mxu0 %v814
    %839 = vmatprep.subr.bf16.mxu0 0
    %840 = vmatpush1.bf16.msra.mxu0 0
    %841 = vmatprep.subr.bf16.mxu0 0
    %842 = vmatpush1.bf16.msra.mxu0 0
    %843 = vmatprep.subr.bf16.mxu0 0
    %844 = vmatpush1.bf16.msra.mxu0 0
    %845 = vmatprep.subr.bf16.mxu0 0
    %846 = vmatpush1.bf16.msra.mxu0 0
    %847 = vmatprep.subr.bf16.mxu0 0
    %848 = vmatpush1.bf16.msra.mxu0 0
    %849 = vmatprep.subr.bf16.mxu0 0
    %850 = vmatpush1.bf16.msra.mxu0 0
    %851 = vmatprep.subr.bf16.mxu0 0
    %852 = vmatpush1.bf16.msra.mxu0 0
    %853 = vmatprep.subr.bf16.mxu0 0
    %854 = vmatpush1.bf16.msra.mxu0 0
    %855 = vmatprep.mubr.bf16.mxu0 0
    %856 = vmatmul.mubr.bf16.gmra.mrb[0].mxu0 %v751
    %v857 = vpop.f32.mrb[0].mxu0
    %v858 = vadd.f32 %v773, %v857
    %v859 = vpop.f32.mrb[0].mxu0
    %v860 = vpop.f32.mrb[0].mxu0
    %v861 = vpop.f32.mrb[0].mxu0
    %862 = vdwg.mxu0
    %v863 = vmax.f32 %v858, 0.0
    %v864 = vpack.c.bf16 %v863, %v863
    %v865 = vld [vmem:[%s5] sm:$0xf]
    %v866 = vld [vmem:[%s5 + $0x4] sm:$0xf]
    %v867 = vld [vmem:[%s5 + $0x8] sm:$0xf]
    %v868 = vld [vmem:[%s5 + $0xc] sm:$0xf]
    %v869 = vld [vmem:[%s5 + $0x10] sm:$0xf]
    %v870 = vld [vmem:[%s5 + $0x14] sm:$0xf]
    %v871 = vld [vmem:[%s5 + $0x18] sm:$0xf]
    %v872 = vld [vmem:[%s5 + $0x1c] sm:$0xf]
    %v873 = vld [vmem:[%s5 + $0x20] sm:$0xf]
    %v874 = vld [vmem:[%s5 + $0x24] sm:$0xf]
    %v875 = vld [vmem:[%s5 + $0x28] sm:$0xf]
    %v876 = vld [vmem:[%s5 + $0x2c] sm:$0xf]
    %v877 = vld [vmem:[%s5 + $0x30] sm:$0xf]
    %v878 = vld [vmem:[%s5 + $0x34] sm:$0xf]
    %v879 = vld [vmem:[%s5 + $0x38] sm:$0xf]
    %v880 = vld [vmem:[%s5 + $0x3c] sm:$0xf]
    %v881 = vld [vmem:[%s6] sm:$0x1]
    %v883 = vlaneseq
    %v884 = vshrl.u32 %v883, 7
    %v885 = vsub.s32 0, %v884
    %v886 = vrot.slane %v881, %v885
    %v904 = vunpack.c.l.b16 %v865
    %v905 = vunpack.c.l.b16 %v866
    %v906 = vunpack.c.l.b16 %v867
    %v907 = vunpack.c.l.b16 %v868
    %v908 = vunpack.c.l.b16 %v869
    %v909 = vunpack.c.l.b16 %v870
    %v910 = vunpack.c.l.b16 %v871
    %v911 = vunpack.c.l.b16 %v872
    %v912 = vunpack.c.l.b16 %v873
    %v913 = vunpack.c.l.b16 %v874
    %v914 = vunpack.c.l.b16 %v875
    %v915 = vunpack.c.l.b16 %v876
    %v916 = vunpack.c.l.b16 %v877
    %v917 = vunpack.c.l.b16 %v878
    %v918 = vunpack.c.l.b16 %v879
    %v919 = vunpack.c.l.b16 %v880
    %v920 = vpack.c.b16 %v905, %v904
    %v921 = vpack.c.b16 %v907, %v906
    %v922 = vpack.c.b16 %v909, %v908
    %v923 = vpack.c.b16 %v911, %v910
    %v924 = vpack.c.b16 %v913, %v912
    %v925 = vpack.c.b16 %v915, %v914
    %v926 = vpack.c.b16 %v917, %v916
    %v927 = vpack.c.b16 %v919, %v918
    %936 = vmatprep.subr.bf16.mxu0 0
    %937 = vmatpush1.bf16.msra.mxu0 %v920
    %938 = vmatprep.subr.bf16.mxu0 0
    %939 = vmatpush1.bf16.msra.mxu0 %v921
    %940 = vmatprep.subr.bf16.mxu0 0
    %941 = vmatpush1.bf16.msra.mxu0 %v922
    %942 = vmatprep.subr.bf16.mxu0 0
    %943 = vmatpush1.bf16.msra.mxu0 %v923
    %944 = vmatprep.subr.bf16.mxu0 0
    %945 = vmatpush1.bf16.msra.mxu0 %v924
    %946 = vmatprep.subr.bf16.mxu0 0
    %947 = vmatpush1.bf16.msra.mxu0 %v925
    %948 = vmatprep.subr.bf16.mxu0 0
    %949 = vmatpush1.bf16.msra.mxu0 %v926
    %950 = vmatprep.subr.bf16.mxu0 0
    %951 = vmatpush1.bf16.msra.mxu0 %v927
    %952 = vmatprep.subr.bf16.mxu0 0
    %953 = vmatpush1.bf16.msra.mxu0 0
    %954 = vmatprep.subr.bf16.mxu0 0
    %955 = vmatpush1.bf16.msra.mxu0 0
    %956 = vmatprep.subr.bf16.mxu0 0
    %957 = vmatpush1.bf16.msra.mxu0 0
    %958 = vmatprep.subr.bf16.mxu0 0
    %959 = vmatpush1.bf16.msra.mxu0 0
    %960 = vmatprep.subr.bf16.mxu0 0
    %961 = vmatpush1.bf16.msra.mxu0 0
    %962 = vmatprep.subr.bf16.mxu0 0
    %963 = vmatpush1.bf16.msra.mxu0 0
    %964 = vmatprep.subr.bf16.mxu0 0
    %965 = vmatpush1.bf16.msra.mxu0 0
    %966 = vmatprep.subr.bf16.mxu0 0
    %967 = vmatpush1.bf16.msra.mxu0 0
    %968 = vmatprep.mubr.bf16.mxu0 0
    %969 = vmatmul.mubr.bf16.gmra.mrb[0].mxu0 %v864
    %v970 = vpop.f32.mrb[0].mxu0
    %v971 = vadd.f32 %v886, %v970
    %v972 = vpop.f32.mrb[0].mxu0
    %v973 = vpop.f32.mrb[0].mxu0
    %v974 = vpop.f32.mrb[0].mxu0
    %975 = vdwg.mxu0
    %vm976 = vcmask 31744
    %977 = vst.msk [vmem:[%s7] sm:$0xff] %vm976, %v971
    // Predicated region
    $region38: #{tpu_custom_call.1} parent=1 // pred_check
      _
    $region39: #{tpu_custom_call.1} parent=1 // pred_check_branch
      %979 = sbr.rel (0) target = $region41
    $region40: #{tpu_custom_call.1} parent=1 // pred_region
      _
    $region41: #{tpu_custom_call.1} parent=1 // pred_fallthru
      _
    // Predicated region
    $region42: #{tpu_custom_call.1} parent=1 // pred_check
      _
    $region43: #{tpu_custom_call.1} parent=1 // pred_check_branch
      %981 = sbr.rel (0) target = $region45
    $region44: #{tpu_custom_call.1} parent=1 // pred_region
      _
    $region45: #{tpu_custom_call.1} parent=1 // pred_fallthru
      _
    %982 = vsyncpa [#allocation3], 1
    %983 = vsyncpa [#allocation5], 1

</llo_original>
